<compile_context>
chip_gen: v7x
topology: tpu7x:2x2x1
jax: 0.10.0
libtpu: 0.0.40
codegen_flags: <defaults>
</compile_context>

<pallas_src>
import functools

import jax
import jax.numpy as jnp
from jax import lax
from jax.experimental import pallas as pl
from jax.experimental.pallas import tpu as pltpu

_LANE = 128


def _round_up(x, m):
    return (x + m - 1) // m * m


def _cdiv(a, b):
    return (a + b - 1) // b


# ---------------------------------------------------------------------------
# Pass 1: conv tile on the MXU, emit only per-tile partial BN statistics.
# ---------------------------------------------------------------------------
def _conv_stats_kernel(p_ref, w_ref, s1_ref, s2_ref):
    # (Cp, K) @ (K, TM) -> (Cp, TM), f32 accumulation on the MXU.
    yt = jnp.dot(w_ref[...], p_ref[0], preferred_element_type=jnp.float32)
    # Per-tile partial stats; zero-padded spatial columns contribute exactly 0.
    s1_ref[...] = jnp.sum(yt, axis=1, keepdims=True).reshape(s1_ref.shape)
    s2_ref[...] = jnp.sum(yt * yt, axis=1, keepdims=True).reshape(s2_ref.shape)


# ---------------------------------------------------------------------------
# Pass 2: recompute the conv tile, fuse folded-BN affine + LeakyReLU, write NCHW.
# ---------------------------------------------------------------------------
def _conv_bn_act_kernel(p_ref, w_ref, scale_ref, shift_ref, o_ref, *,
                        neg_slope, activate, cout):
    yt = jnp.dot(w_ref[...], p_ref[0], preferred_element_type=jnp.float32)  # (Cp, TM)
    z = yt * scale_ref[...] + shift_ref[...]          # (Cp,1) broadcast across lanes
    if activate:
        z = jnp.where(z >= 0, z, neg_slope * z)
    # Drop the padded channels; store is 128-lane dense along the spatial axis.
    o_ref[...] = z[:cout, :].reshape(o_ref.shape).astype(o_ref.dtype)


def conv2d_norm_leakyrelu(x, weight, gamma, beta, *, stride=1, padding=0,
                          eps=1e-5, neg_slope=0.1, activate=True,
                          tile_rows=2048, matmul_dtype=jnp.bfloat16,
                          vmem_limit_bytes=32 * 1024 * 1024):
    """x: (N, Cin, H, W) float32 (PyTorch NCHW). weight: (Cout, Cin, kH, kW).

    tile_rows: target output pixels per grid step (per image). On v5e/v6e raise
    vmem_limit_bytes toward 64-96 MiB and tile_rows toward 4096 to amortize the
    ~0.35 us per-grid-step overhead; the 32 MiB default is safe on every generation.
    Conv bias is not supported (the module constructs the conv with bias=False).
    """
    n, cin, h, w_in = x.shape
    cout, cin_w, kh, kw = weight.shape
    assert cin == cin_w
    oh = (h + 2 * padding - kh) // stride + 1
    ow = (w_in + 2 * padding - kw) // stride + 1
    ohw = oh * ow
    k = cin * kh * kw                      # contraction dim, kept UNPADDED
    cp = _round_up(cout, _LANE)            # output channels padded to 128 lanes (MXU)

    # Per-image spatial tiling with minimal padding waste and >= 2 total grid steps
    # whenever N >= 2 (keeps v7x's two TensorCores busy on the "parallel" grid).
    num_t = max(1, _cdiv(ohw, max(int(tile_rows), 1)))
    tm = _round_up(_cdiv(ohw, num_t), _LANE)
    ohw_p = tm * num_t

    # --- glue: im2col, channel-major (N, K, OHW) so the kernel GEMM result is already
    #     channel-major and the final NCHW layout needs no transpose anywhere. ---
    xp = jnp.pad(x, ((0, 0), (0, 0), (padding, padding), (padding, padding)))
    cols = []
    for i in range(kh):
        for j in range(kw):
            cols.append(xp[:, :, i:i + oh * stride:stride, j:j + ow * stride:stride])
    patches = jnp.stack(cols, axis=0)                      # (kh*kw, N, Cin, OH, OW)
    patches = jnp.transpose(patches, (1, 2, 0, 3, 4))      # (N, Cin, kh*kw, OH, OW)
    patches = patches.reshape(n, k, ohw)                   # rows = (ci, kh, kw)
    patches = jnp.pad(patches, ((0, 0), (0, 0), (0, ohw_p - ohw))).astype(matmul_dtype)

    # weight as (Cp, K): matching (ci, kh, kw) column order, channel rows zero-padded.
    w_mat = weight.reshape(cout, k)
    w_mat = jnp.pad(w_mat, ((0, cp - cout), (0, 0))).astype(matmul_dtype)

    gamma_p = jnp.pad(gamma.astype(jnp.float32), (0, cp - cout), constant_values=1.0)
    beta_p = jnp.pad(beta.astype(jnp.float32), (0, cp - cout))

    compiler_params = pltpu.CompilerParams(
        dimension_semantics=("parallel", "parallel"),
        vmem_limit_bytes=vmem_limit_bytes,
    )
    grid = (n, num_t)
    p_spec = pl.BlockSpec((1, k, tm), lambda b, t: (b, 0, t))
    w_spec = pl.BlockSpec((cp, k), lambda b, t: (0, 0))

    # ---- pass 1: per-tile partial sums / sums-of-squares only (no y intermediate) ----
    s1p, s2p = pl.pallas_call(
        _conv_stats_kernel,
        out_shape=(
            jax.ShapeDtypeStruct((n, num_t, cp, 1), jnp.float32),
            jax.ShapeDtypeStruct((n, num_t, cp, 1), jnp.float32),
        ),
        grid_spec=pltpu.PrefetchScalarGridSpec(
            num_scalar_prefetch=0,
            grid=grid,
            in_specs=[p_spec, w_spec],
            out_specs=(
                pl.BlockSpec((1, 1, cp, 1), lambda b, t: (b, t, 0, 0)),
                pl.BlockSpec((1, 1, cp, 1), lambda b, t: (b, t, 0, 0)),
            ),
        ),
        compiler_params=compiler_params,
    )(patches, w_mat)

    # ---- tiny cross-tile reduction + BN -> per-channel affine folding ----
    # NOTE: E[y^2] - E[y]^2 in f32 (single pass). Adequate here; for extreme |mean|/std
    # or huge reductions switch to centered per-tile partials.
    count = float(n * ohw)                                 # true pixel count (pads gave 0)
    s1 = jnp.sum(s1p, axis=(0, 1))[:, 0]                   # (Cp,)
    s2 = jnp.sum(s2p, axis=(0, 1))[:, 0]
    mean = s1 / count
    var = jnp.maximum(s2 / count - mean * mean, 0.0)       # biased var (train-mode BN)
    inv = lax.rsqrt(var + eps)
    scale = (gamma_p * inv).reshape(cp, 1)
    shift = (beta_p - mean * gamma_p * inv).reshape(cp, 1)

    # ---- pass 2: recompute conv tile, fused affine + LeakyReLU, direct NCHW stores ----
    kernel2 = functools.partial(_conv_bn_act_kernel, neg_slope=neg_slope,
                                activate=activate, cout=cout)
    out3 = pl.pallas_call(
        kernel2,
        out_shape=jax.ShapeDtypeStruct((n, cout, ohw_p), jnp.float32),
        grid_spec=pltpu.PrefetchScalarGridSpec(
            num_scalar_prefetch=0,
            grid=grid,
            in_specs=[p_spec, w_spec,
                      pl.BlockSpec((cp, 1), lambda b, t: (0, 0)),
                      pl.BlockSpec((cp, 1), lambda b, t: (0, 0))],
            out_specs=pl.BlockSpec((1, cout, tm), lambda b, t: (b, 0, t)),
        ),
        compiler_params=compiler_params,
    )(patches, w_mat, scale, shift)

    if ohw_p != ohw:
        out3 = out3[:, :, :ohw]
    return out3.reshape(n, cout, oh, ow)       # free reshape: already NCHW-ordered


def _reference(x, weight, gamma, beta, *, stride, padding, eps=1e-5, neg_slope=0.1):
    """Pure-JAX reference matching the PyTorch forward (training-mode BN)."""
    y = lax.conv_general_dilated(
        x, weight, window_strides=(stride, stride),
        padding=[(padding, padding), (padding, padding)],
        dimension_numbers=("NCHW", "OIHW", "NCHW"))
    mean = jnp.mean(y, axis=(0, 2, 3), keepdims=True)
    var = jnp.mean((y - mean) ** 2, axis=(0, 2, 3), keepdims=True)
    y = (y - mean) / jnp.sqrt(var + eps)
    y = y * gamma.reshape(1, -1, 1, 1) + beta.reshape(1, -1, 1, 1)
    return jnp.where(y >= 0, y, neg_slope * y)


if __name__ == "__main__":
    key = jax.random.PRNGKey(0)
    k1, k2, k3, k4 = jax.random.split(key, 4)

    # module config: Conv2dNormLeakyReluBlock(in_channels=4, out_channels=8,
    #                                         kernel_size=3, stride=1, padding=1, bias=False)
    N, CIN, H, W = 2, 4, 16, 16
    COUT, KS, STRIDE, PAD = 8, 3, 1, 1

    x = jax.random.normal(k1, (N, CIN, H, W), dtype=jnp.float32)
    conv_w = jax.random.normal(k2, (COUT, CIN, KS, KS), dtype=jnp.float32) * 0.1
    bn_gamma = 1.0 + 0.1 * jax.random.normal(k3, (COUT,), dtype=jnp.float32)
    bn_beta = 0.1 * jax.random.normal(k4, (COUT,), dtype=jnp.float32)

    # Small tile (128 pixels) so the test exercises the multi-tile BN-stats path:
    # OH*OW = 256 per image -> 2 spatial tiles x 2 images = 4 grid steps.
    out = conv2d_norm_leakyrelu(x, conv_w, bn_gamma, bn_beta,
                                stride=STRIDE, padding=PAD, activate=True,
                                tile_rows=128)
    out = jax.block_until_ready(out)
    assert out.shape == (N, COUT, H, W)

    # Tight check vs a reference using the same bf16 input quantization as the MXU
    # path (products exact in bf16, accumulation in f32 in both paths).
    xq = x.astype(jnp.bfloat16).astype(jnp.float32)
    wq = conv_w.astype(jnp.bfloat16).astype(jnp.float32)
    ref_q = _reference(xq, wq, bn_gamma, bn_beta, stride=STRIDE, padding=PAD)
    assert jnp.allclose(out, ref_q, atol=1e-3, rtol=1e-3), "mismatch vs bf16-quantized reference"

    # Loose sanity check vs the full-f32 reference (bf16 MXU inputs only introduce
    # ~1e-2-scale deviations on unit-variance post-BN activations).
    ref = _reference(x, conv_w, bn_gamma, bn_beta, stride=STRIDE, padding=PAD)
    assert jnp.allclose(out, ref, atol=6e-2, rtol=6e-2), "mismatch vs f32 reference"

    print("KERNEL_OK")
</pallas_src>

<mosaic_0001>
module attributes {stable_mosaic.version = 11 : i64} {
  func.func @_conv_stats_kernel(%arg0: i32, %arg1: i32, %arg2: memref<1x36x128xbf16, #tpu.memory_space<vmem>>, %arg3: memref<128x36xbf16, #tpu.memory_space<vmem>>, %arg4: memref<1x1x128x1xf32, #tpu.memory_space<vmem>>, %arg5: memref<1x1x128x1xf32, #tpu.memory_space<vmem>>) attributes {dimension_semantics = [#tpu.dimension_semantics<parallel>, #tpu.dimension_semantics<parallel>], iteration_bounds = array<i64: 2, 2>, scalar_prefetch = 0 : i64, scratch_operands = 0 : i64, tpu.core_type = #tpu.core_type<tc>, window_params = [{transform_indices = @transform_0, window_bounds = array<i64: 1, 36, 128>}, {pipeline_mode = #tpu.pipeline_mode<synchronous>, transform_indices = @transform_1, window_bounds = array<i64: 128, 36>}, {transform_indices = @transform_2, window_bounds = array<i64: 1, 1, 128, 1>}, {transform_indices = @transform_3, window_bounds = array<i64: 1, 1, 128, 1>}]} {
    %c0 = arith.constant 0 : index
    %c0_0 = arith.constant 0 : index
    %0 = vector.load %arg3[%c0, %c0_0] : memref<128x36xbf16, #tpu.memory_space<vmem>>, vector<128x36xbf16>
    %c0_1 = arith.constant 0 : index
    %c0_2 = arith.constant 0 : index
    %c0_3 = arith.constant 0 : index
    %1 = vector.load %arg2[%c0_1, %c0_2, %c0_3] : memref<1x36x128xbf16, #tpu.memory_space<vmem>>, vector<1x36x128xbf16>
    %2 = vector.shape_cast %1 : vector<1x36x128xbf16> to vector<36x128xbf16>
    %cst = arith.constant dense<0.000000e+00> : vector<128x128xf32>
    %3 = tpu.matmul %0, %2, %cst {dimension_numbers = #tpu.dot_dimension_numbers<[1], [0], [0], [1], [0, 0, 1, 1], [], []>} : vector<128x36xbf16>, vector<36x128xbf16>, vector<128x128xf32> -> vector<128x128xf32>
    %cst_4 = arith.constant dense<0.000000e+00> : vector<128xf32>
    %4 = vector.multi_reduction <add>, %3, %cst_4 [1] : vector<128x128xf32> to vector<128xf32>
    %5 = vector.shape_cast %4 : vector<128xf32> to vector<128x1xf32>
    %6 = vector.shape_cast %5 : vector<128x1xf32> to vector<1x1x128x1xf32>
    %c0_5 = arith.constant 0 : index
    %c0_6 = arith.constant 0 : index
    %c0_7 = arith.constant 0 : index
    %c0_8 = arith.constant 0 : index
    %7 = vector.load %arg4[%c0_5, %c0_6, %c0_7, %c0_8] : memref<1x1x128x1xf32, #tpu.memory_space<vmem>>, vector<1x1x128x1xf32>
    tpu.vector_store %arg4[%c0_5, %c0_6, %c0_7, %c0_8], %6 {strides = array<i32>} : memref<1x1x128x1xf32, #tpu.memory_space<vmem>>, vector<1x1x128x1xf32>,
    %8 = arith.mulf %3, %3 : vector<128x128xf32>
    %cst_9 = arith.constant dense<0.000000e+00> : vector<128xf32>
    %9 = vector.multi_reduction <add>, %8, %cst_9 [1] : vector<128x128xf32> to vector<128xf32>
    %10 = vector.shape_cast %9 : vector<128xf32> to vector<128x1xf32>
    %11 = vector.shape_cast %10 : vector<128x1xf32> to vector<1x1x128x1xf32>
    %c0_10 = arith.constant 0 : index
    %c0_11 = arith.constant 0 : index
    %c0_12 = arith.constant 0 : index
    %c0_13 = arith.constant 0 : index
    %12 = vector.load %arg5[%c0_10, %c0_11, %c0_12, %c0_13] : memref<1x1x128x1xf32, #tpu.memory_space<vmem>>, vector<1x1x128x1xf32>
    tpu.vector_store %arg5[%c0_10, %c0_11, %c0_12, %c0_13], %11 {strides = array<i32>} : memref<1x1x128x1xf32, #tpu.memory_space<vmem>>, vector<1x1x128x1xf32>,
    return
  }
  func.func @transform_0(%arg0: i32, %arg1: i32) -> (i32, i32, i32) {
    %c0_i32 = arith.constant 0 : i32
    %c0_i32_0 = arith.constant 0 : i32
    return %arg0, %c0_i32, %arg1 : i32, i32, i32
  }
  func.func @transform_1(%arg0: i32, %arg1: i32) -> (i32, i32) {
    %c0_i32 = arith.constant 0 : i32
    %c0_i32_0 = arith.constant 0 : i32
    %c0_i32_1 = arith.constant 0 : i32
    return %c0_i32, %c0_i32_0 : i32, i32
  }
  func.func @transform_2(%arg0: i32, %arg1: i32) -> (i32, i32, i32, i32) {
    %c0_i32 = arith.constant 0 : i32
    %c0_i32_0 = arith.constant 0 : i32
    %c0_i32_1 = arith.constant 0 : i32
    return %arg0, %arg1, %c0_i32, %c0_i32_0 : i32, i32, i32, i32
  }
  func.func @transform_3(%arg0: i32, %arg1: i32) -> (i32, i32, i32, i32) {
    %c0_i32 = arith.constant 0 : i32
    %c0_i32_0 = arith.constant 0 : i32
    %c0_i32_1 = arith.constant 0 : i32
    return %arg0, %arg1, %c0_i32, %c0_i32_0 : i32, i32, i32, i32
  }
}

</mosaic_0001>

<llo_original>
// kernel: tpu_custom_call.1
$region0: #{tpu_custom_call.1}
  #allocation0 [shape = 'u32[]', space=smem, size = 0x4, offset = 0x4, fixed_abs, tag = 'smem constant byte address 0x4 - core index']
  #allocation1 [shape = 'u32[144,128]{1,0:T(1,128)}', space=vmem, size = 0x12000, scoped, tag = 'internal scratch']
  %s0 = inlined_call_operand.vmem [shape: bf16[2,36,256], index: 0, kind: input, shape index: {}]
  %s1 = inlined_call_operand.vmem [shape: bf16[128,36], index: 1, kind: input, shape index: {}]
  %s2 = inlined_call_operand.vmem [shape: f32[2,2,128,1], index: 2, kind: output, shape index: {0}]
  %s3 = inlined_call_operand.vmem [shape: f32[2,2,128,1], index: 3, kind: output, shape index: {1}]
  %4 = xla_tuple %s2, %s3
  %s5 = sld [smem:[#allocation0]]
  $region90: #{tpu_custom_call.1} parent=0
    _
  %s7 = ssub.s32 1, %s5
  %s8 = scalar_select 0, %s7, %s5
  $region1: #{tpu_custom_call.1} parent=0
    #allocation2 [shape = 'u8[20480]{0}', space=vmem, size = 0x5000, scoped, tag = 'input window, operand 0']
    loop: start=0, step=1, limit=6
    $region2: #{tpu_custom_call.1} parent=1 // loop_pre_header
      _
    $region3: #{tpu_custom_call.1} parent=1 // loop_header
      %s10 = sphi 0, %s14
      %p11 = scmp.ge.s32.totalorder %s10, 6
      %s17 = sphi 0, %s29
      %s18 = sphi 0, %s25
      %s19 = sphi 0, %s17
      %s20 = sphi 0, %s18
      %s21 = sphi 0, %s19
      %s22 = sphi 0, %s20
      %s34 = sphi 0, %s36
      %s37 = sphi 0, %s34
      %s38 = sphi 0, %s37
      %s54 = sphi 0, %s38
      %s58 = sphi 0, %s58
      %s60 = sphi 0, %s58
      %s61 = sphi 0, %s60
      %s75 = sphi 0, %s61
      %s83 = sphi 0, %s85
      %s86 = sphi 0, %s83
      %s87 = sphi 0, %s86
      %s103 = sphi 0, %s87
      %s111 = sphi 0, %s113
      %s114 = sphi 0, %s111
      %s115 = sphi 0, %s114
      %s131 = sphi 0, %s115
    $region4: #{tpu_custom_call.1} parent=1 // loop_header_branch
      %13 = sbr.rel (%p11) target = $region8
    $region5: #{tpu_custom_call.1} parent=1 // loop_body
      %s15 = ssub.s32 %s10, 1
      %s16 = ssub.s32 %s10, 2
      %s23 = sadd.s32 1, %s18
      %p24 = scmp.ge.s32.totalorder %s23, 2
      %s25 = scalar_select %p24, 0, %s23
      %s26 = sadd.s32 1, %s17
      %s27 = scalar_select %p24, %s26, %s17
      %p28 = scmp.ge.s32.totalorder %s27, 2
      %s29 = scalar_select %p28, 0, %s27
      %s30 = ssub.s32 %s17, %s29
      %s31 = ssub.s32 %s18, %s25
      %s32 = sor.u32 %s30, %s31
      %p33 = scmp.eq.s32.totalorder %s32, 0
      %s35 = sadd.s32 %s34, 1
      %s36 = scalar_select %p33, %s34, %s35
      %p39 = pneg %p33
      %p40 = scmp.eq.s32.totalorder %s10, 3
      %p41 = por %p39, %p40
      %p42 = scmp.ne.s32.totalorder %s34, %s37
      %p43 = scmp.eq.s32.totalorder %s10, 0
      %p44 = por %p42, %p43
      %p45 = scmp.ne.s32.totalorder %s34, %s37
      %p46 = scmp.eq.s32.totalorder %s15, 3
      %p47 = por %p45, %p46
      %p48 = scmp.ne.s32.totalorder %s37, %s38
      %p49 = scmp.eq.s32.totalorder %s15, 0
      %p50 = por %p48, %p49
      %p51 = scmp.ne.s32.totalorder %s37, %s38
      %p52 = scmp.eq.s32.totalorder %s16, 3
      %p53 = por %p51, %p52
      %p55 = scmp.ne.s32.totalorder %s38, %s54
      %p56 = scmp.eq.s32.totalorder %s16, 0
      %p57 = por %p55, %p56
      %s59 = sadd.s32 %s58, 1
      %p62 = scmp.eq.s32.totalorder %s10, 3
      %p63 = scmp.ne.s32.totalorder %s58, %s60
      %p64 = scmp.eq.s32.totalorder %s10, 0
      %p65 = por %p63, %p64
      %p66 = scmp.ne.s32.totalorder %s58, %s60
      %p67 = scmp.eq.s32.totalorder %s15, 3
      %p68 = por %p66, %p67
      %p69 = scmp.ne.s32.totalorder %s60, %s61
      %p70 = scmp.eq.s32.totalorder %s15, 0
      %p71 = por %p69, %p70
      %p72 = scmp.ne.s32.totalorder %s60, %s61
      %p73 = scmp.eq.s32.totalorder %s16, 3
      %p74 = por %p72, %p73
      %p76 = scmp.ne.s32.totalorder %s61, %s75
      %p77 = scmp.eq.s32.totalorder %s16, 0
      %p78 = por %p76, %p77
      %s79 = ssub.s32 %s17, %s29
      %s80 = ssub.s32 %s18, %s25
      %s81 = sor.u32 %s79, %s80
      %p82 = scmp.eq.s32.totalorder %s81, 0
      %s84 = sadd.s32 %s83, 1
      %s85 = scalar_select %p82, %s83, %s84
      %p88 = pneg %p82
      %p89 = scmp.eq.s32.totalorder %s10, 3
      %p90 = por %p88, %p89
      %p91 = scmp.ne.s32.totalorder %s83, %s86
      %p92 = scmp.eq.s32.totalorder %s10, 0
      %p93 = por %p91, %p92
      %p94 = scmp.ne.s32.totalorder %s83, %s86
      %p95 = scmp.eq.s32.totalorder %s15, 3
      %p96 = por %p94, %p95
      %p97 = scmp.ne.s32.totalorder %s86, %s87
      %p98 = scmp.eq.s32.totalorder %s15, 0
      %p99 = por %p97, %p98
      %p100 = scmp.ne.s32.totalorder %s86, %s87
      %p101 = scmp.eq.s32.totalorder %s16, 3
      %p102 = por %p100, %p101
      %p104 = scmp.ne.s32.totalorder %s87, %s103
      %p105 = scmp.eq.s32.totalorder %s16, 0
      %p106 = por %p104, %p105
      %s107 = ssub.s32 %s17, %s29
      %s108 = ssub.s32 %s18, %s25
      %s109 = sor.u32 %s107, %s108
      %p110 = scmp.eq.s32.totalorder %s109, 0
      %s112 = sadd.s32 %s111, 1
      %s113 = scalar_select %p110, %s111, %s112
      %p116 = pneg %p110
      %p117 = scmp.eq.s32.totalorder %s10, 3
      %p118 = por %p116, %p117
      %p119 = scmp.ne.s32.totalorder %s111, %s114
      %p120 = scmp.eq.s32.totalorder %s10, 0
      %p121 = por %p119, %p120
      %p122 = scmp.ne.s32.totalorder %s111, %s114
      %p123 = scmp.eq.s32.totalorder %s15, 3
      %p124 = por %p122, %p123
      %p125 = scmp.ne.s32.totalorder %s114, %s115
      %p126 = scmp.eq.s32.totalorder %s15, 0
      %p127 = por %p125, %p126
      %p128 = scmp.ne.s32.totalorder %s114, %s115
      %p129 = scmp.eq.s32.totalorder %s16, 3
      %p130 = por %p128, %p129
      %p132 = scmp.ne.s32.totalorder %s115, %s131
      %p133 = scmp.eq.s32.totalorder %s16, 0
      %p134 = por %p132, %p133
      %p135 = scmp.le.s32.totalorder 1, %s10
      %p136 = scmp.lt.s32.totalorder %s10, 5
      %p137 = pnand %p135, %p136
      %p138 = pneg %p137
      // Predicated region
      $region9: #{tpu_custom_call.1} parent=5 // pred_check
        _
      $region10: #{tpu_custom_call.1} parent=5 // pred_check_branch
        %140 = sbr.rel (%p137) target = $region12
      $region11: #{tpu_custom_call.1} parent=5 // pred_region
        %s141 = ssub.s32 %s10, 1
        // Predicated region
        $region13: #{tpu_custom_call.1} parent=11 // pred_check
          %p142 = pneg %p71
        $region14: #{tpu_custom_call.1} parent=11 // pred_check_branch
          %144 = sbr.rel (%p142) target = $region16
        $region15: #{tpu_custom_call.1} parent=11 // pred_region
          _
        $region16: #{tpu_custom_call.1} parent=11 // pred_fallthru
          _
      $region12: #{tpu_custom_call.1} parent=5 // pred_fallthru
        _
      %p145 = scmp.lt.s32.totalorder %s10, 4
      // Predicated region
      $region17: #{tpu_custom_call.1} parent=5 // pred_check
        %p146 = pneg %p145
      $region18: #{tpu_custom_call.1} parent=5 // pred_check_branch
        %148 = sbr.rel (%p146) target = $region20
      $region19: #{tpu_custom_call.1} parent=5 // pred_region
        // Predicated region
        $region21: #{tpu_custom_call.1} parent=19 // pred_check
          %p149 = pneg %p44
        $region22: #{tpu_custom_call.1} parent=19 // pred_check_branch
          %151 = sbr.rel (%p149) target = $region24
        $region23: #{tpu_custom_call.1} parent=19 // pred_region
          %s152 = sand.u32 %s34, 1
          %s153 = sand.u32 %s34, 1
          %s154 = smul.addr %s153, 20
          %s155 = scalar_lea.vmem [#allocation2], %s154
          %s156 = smul.addr %s17, 10
          %s157 = sadd.s32 %s18, %s156
          %s158 = smul.addr %s157, 4
          %s159 = scalar_lea.vmem %s0, %s158
          // Predicated region
          $region25: #{tpu_custom_call.1} parent=23 // pred_check
            _
          $region26: #{tpu_custom_call.1} parent=23 // pred_check_branch
            %161 = sbr.rel (0) target = $region28
          $region27: #{tpu_custom_call.1} parent=23 // pred_region
            // Predicated region
            $region29: #{tpu_custom_call.1} parent=27 // pred_check
              _
            $region30: #{tpu_custom_call.1} parent=27 // pred_check_branch
              %163 = sbr.rel target = $region32
            $region31: #{tpu_custom_call.1} parent=27 // pred_region
              // Predicated region
              $region44: #{tpu_custom_call.1} parent=31 // pred_check
                _
              $region45: #{tpu_custom_call.1} parent=31 // pred_check_branch
                %186 = sbr.rel (0) target = $region47
              $region46: #{tpu_custom_call.1} parent=31 // pred_region
                loop: start=0, step=1, limit=1
                $region48: #{tpu_custom_call.1} parent=46 // loop_pre_header
                  _
                $region49: #{tpu_custom_call.1} parent=46 // loop_header
                  %s188 = sphi 0, %s192
                  %p189 = scmp.ge.s32.totalorder %s188, 1
                  %s193 = sphi %s159, %s159
                  %s194 = sphi %s155, %s155
                $region50: #{tpu_custom_call.1} parent=46 // loop_header_branch
                  %191 = sbr.rel (%p189) target = $region54
                $region51: #{tpu_custom_call.1} parent=46 // loop_body
                  _
                $region52: #{tpu_custom_call.1} parent=46 // loop_footer
                  %s192 = sadd.s32 1, %s188
                $region53: #{tpu_custom_call.1} parent=46 // loop_footer_branch
                  %187 = sbr.rel target = $region49
                $region54: #{tpu_custom_call.1} parent=46 // loop_exit
                  _
                loop: start=0, step=1, limit=1
                $region55: #{tpu_custom_call.1} parent=46 // loop_pre_header
                  _
                $region56: #{tpu_custom_call.1} parent=46 // loop_header
                  %s197 = sphi 0, %s201
                  %p198 = scmp.ge.s32.totalorder %s197, 1
                  %s202 = sphi %s159, %s159
                  %s203 = sphi %s155, %s155
                $region57: #{tpu_custom_call.1} parent=46 // loop_header_branch
                  %200 = sbr.rel (%p198) target = $region61
                $region58: #{tpu_custom_call.1} parent=46 // loop_body
                  %v204 = vld [vmem:[%s202] sm:$0xf]
                  %205 = vst [vmem:[%s203] sm:$0xf] %v204
                  %v206 = vld [vmem:[%s202 + $0x8] sm:$0xf]
                  %207 = vst [vmem:[%s203 + $0x4] sm:$0xf] %v206
                  %v208 = vld [vmem:[%s202 + $0x10] sm:$0xf]
                  %209 = vst [vmem:[%s203 + $0x8] sm:$0xf] %v208
                  %v210 = vld [vmem:[%s202 + $0x18] sm:$0xf]
                  %211 = vst [vmem:[%s203 + $0xc] sm:$0xf] %v210
                  %v212 = vld [vmem:[%s202 + $0x20] sm:$0xf]
                  %213 = vst [vmem:[%s203 + $0x10] sm:$0xf] %v212
                $region59: #{tpu_custom_call.1} parent=46 // loop_footer
                  %s201 = sadd.s32 1, %s197
                $region60: #{tpu_custom_call.1} parent=46 // loop_footer_branch
                  %196 = sbr.rel target = $region56
                $region61: #{tpu_custom_call.1} parent=46 // loop_exit
                  _
              $region47: #{tpu_custom_call.1} parent=31 // pred_fallthru
                _
            $region32: #{tpu_custom_call.1} parent=27 // pred_fallthru
              _
            // Predicated region
            $region33: #{tpu_custom_call.1} parent=27 // pred_check
              _
            $region34: #{tpu_custom_call.1} parent=27 // pred_check_branch
              %165 = sbr.rel (0) target = $region36
            $region35: #{tpu_custom_call.1} parent=27 // pred_region
              loop: start=0, step=1, limit=1
              $region37: #{tpu_custom_call.1} parent=35 // loop_pre_header
                _
              $region38: #{tpu_custom_call.1} parent=35 // loop_header
                %s168 = sphi 0, %s172
                %p169 = scmp.ge.s32.totalorder %s168, 1
                %s173 = sphi %s159, %s159
                %s174 = sphi %s155, %s155
              $region39: #{tpu_custom_call.1} parent=35 // loop_header_branch
                %171 = sbr.rel (%p169) target = $region43
              $region40: #{tpu_custom_call.1} parent=35 // loop_body
                %v175 = vld [vmem:[%s173] sm:$0xf]
                %176 = vst [vmem:[%s174] sm:$0xf] %v175
                %v177 = vld [vmem:[%s173 + $0x8] sm:$0xf]
                %178 = vst [vmem:[%s174 + $0x4] sm:$0xf] %v177
                %v179 = vld [vmem:[%s173 + $0x10] sm:$0xf]
                %180 = vst [vmem:[%s174 + $0x8] sm:$0xf] %v179
                %v181 = vld [vmem:[%s173 + $0x18] sm:$0xf]
                %182 = vst [vmem:[%s174 + $0xc] sm:$0xf] %v181
                %v183 = vld [vmem:[%s173 + $0x20] sm:$0xf]
                %184 = vst [vmem:[%s174 + $0x10] sm:$0xf] %v183
              $region41: #{tpu_custom_call.1} parent=35 // loop_footer
                %s172 = sadd.s32 1, %s168
              $region42: #{tpu_custom_call.1} parent=35 // loop_footer_branch
                %167 = sbr.rel target = $region38
              $region43: #{tpu_custom_call.1} parent=35 // loop_exit
                _
            $region36: #{tpu_custom_call.1} parent=27 // pred_fallthru
              _
          $region28: #{tpu_custom_call.1} parent=23 // pred_fallthru
            _
          %214 = vnop
        $region24: #{tpu_custom_call.1} parent=19 // pred_fallthru
          _
      $region20: #{tpu_custom_call.1} parent=5 // pred_fallthru
        _
      %p215 = scmp.le.s32.totalorder 1, %s10
      %p216 = scmp.lt.s32.totalorder %s10, 5
      %p217 = pnand %p215, %p216
      %p218 = pneg %p217
      // Predicated region
      $region62: #{tpu_custom_call.1} parent=5 // pred_check
        _
      $region63: #{tpu_custom_call.1} parent=5 // pred_check_branch
        %220 = sbr.rel (%p217) target = $region65
      $region64: #{tpu_custom_call.1} parent=5 // pred_region
        %s221 = ssub.s32 %s10, 1
        %s222 = sand.u32 %s37, 1
        %s223 = sand.u32 %s37, 1
        %s224 = smul.addr %s223, 20
        %s225 = scalar_lea.vmem [#allocation2], %s224
        // Predicated region
        $region66: #{tpu_custom_call.1} parent=64 // pred_check
          %p226 = pneg %p50
        $region67: #{tpu_custom_call.1} parent=64 // pred_check_branch
          %228 = sbr.rel (%p226) target = $region69
        $region68: #{tpu_custom_call.1} parent=64 // pred_region
          _
        $region69: #{tpu_custom_call.1} parent=64 // pred_fallthru
          _
        %s229 = sand.u32 %s37, 1
        %s230 = sand.u32 %s37, 1
        %s231 = smul.addr %s230, 20
        %s232 = scalar_lea.vmem [#allocation2], %s231
        %p233 = pneg %p50
        %p234 = pneg %p47
        %p235 = pneg %p71
        %p236 = pneg %p68
        %p237 = pneg %p99
        %p238 = pneg %p96
        %p239 = scmp.lt.s32.totalorder %s19, 1
        %s240 = scalar_select %p239, %s19, 1
        %p241 = scmp.lt.s32.totalorder %s20, 1
        %s242 = scalar_select %p241, %s20, 1
        %s243 = smul.addr %s242, 16
        %s244 = smul.addr %s240, 32
        %s245 = sadd.s32 %s243, %s244
        %s246 = smul.addr %s245, 8
        %s247 = scalar_lea.vmem %s2, %s246
        %p248 = pneg %p127
        %p249 = pneg %p124
        %p250 = scmp.lt.s32.totalorder %s19, 1
        %s251 = scalar_select %p250, %s19, 1
        %p252 = scmp.lt.s32.totalorder %s20, 1
        %s253 = scalar_select %p252, %s20, 1
        %s254 = smul.addr %s253, 16
        %s255 = smul.addr %s251, 32
        %s256 = sadd.s32 %s254, %s255
        %s257 = smul.addr %s256, 8
        %s258 = scalar_lea.vmem %s3, %s257
        %p259 = scmp.lt.s32.totalorder %s19, 1
        %s260 = scalar_select %p259, %s19, 1
        %p261 = scmp.lt.s32.totalorder %s20, 1
        %s262 = scalar_select %p261, %s20, 1
        %s263 = smul.addr %s262, 16
        %s264 = smul.addr %s260, 32
        %s265 = sadd.s32 %s263, %s264
        %s266 = smul.addr %s265, 8
        %s267 = scalar_lea.vmem %s2, %s266
        %p268 = scmp.lt.s32.totalorder %s19, 1
        %s269 = scalar_select %p268, %s19, 1
        %p270 = scmp.lt.s32.totalorder %s20, 1
        %s271 = scalar_select %p270, %s20, 1
        %s272 = smul.addr %s271, 16
        %s273 = smul.addr %s269, 32
        %s274 = sadd.s32 %s272, %s273
        %s275 = smul.addr %s274, 8
        %s276 = scalar_lea.vmem %s3, %s275
        %v278 = vld [vmem:[%s1] sm:$0xf]
        %v279 = vld [vmem:[%s1 + $0x4] sm:$0xf]
        %v280 = vld [vmem:[%s1 + $0x8] sm:$0xf]
        %v281 = vld [vmem:[%s1 + $0xc] sm:$0xf]
        %v282 = vld [vmem:[%s1 + $0x10] sm:$0xf]
        %v283 = vld [vmem:[%s1 + $0x14] sm:$0xf]
        %v284 = vld [vmem:[%s1 + $0x18] sm:$0xf]
        %v285 = vld [vmem:[%s1 + $0x1c] sm:$0xf]
        %v286 = vld [vmem:[%s1 + $0x20] sm:$0xf]
        %v287 = vld [vmem:[%s1 + $0x24] sm:$0xf]
        %v288 = vld [vmem:[%s1 + $0x28] sm:$0xf]
        %v289 = vld [vmem:[%s1 + $0x2c] sm:$0xf]
        %v290 = vld [vmem:[%s1 + $0x30] sm:$0xf]
        %v291 = vld [vmem:[%s1 + $0x34] sm:$0xf]
        %v292 = vld [vmem:[%s1 + $0x38] sm:$0xf]
        %v293 = vld [vmem:[%s1 + $0x3c] sm:$0xf]
        %v294 = vld [vmem:[%s225] sm:$0xf]
        %v295 = vld [vmem:[%s225 + $0x4] sm:$0xf]
        %v296 = vld [vmem:[%s225 + $0x8] sm:$0xf]
        %v297 = vld [vmem:[%s225 + $0xc] sm:$0xf]
        %v298 = vld [vmem:[%s225 + $0x10] sm:$0x3]
        %v315 = vunpack.c.l.b16 %v278
        %v316 = vunpack.c.l.b16 %v279
        %v317 = vunpack.c.l.b16 %v280
        %v318 = vunpack.c.l.b16 %v281
        %v319 = vunpack.c.l.b16 %v282
        %v320 = vunpack.c.l.b16 %v283
        %v321 = vunpack.c.l.b16 %v284
        %v322 = vunpack.c.l.b16 %v285
        %v323 = vunpack.c.l.b16 %v286
        %v324 = vunpack.c.l.b16 %v287
        %v325 = vunpack.c.l.b16 %v288
        %v326 = vunpack.c.l.b16 %v289
        %v327 = vunpack.c.l.b16 %v290
        %v328 = vunpack.c.l.b16 %v291
        %v329 = vunpack.c.l.b16 %v292
        %v330 = vunpack.c.l.b16 %v293
        %v331 = vpack.c.b16 %v316, %v315
        %v332 = vpack.c.b16 %v318, %v317
        %v333 = vpack.c.b16 %v320, %v319
        %v334 = vpack.c.b16 %v322, %v321
        %v335 = vpack.c.b16 %v324, %v323
        %v336 = vpack.c.b16 %v326, %v325
        %v337 = vpack.c.b16 %v328, %v327
        %v338 = vpack.c.b16 %v330, %v329
        %v344 = vunpack.c.l.b16 %v294
        %v345 = vunpack.c.l.b16 %v295
        %v346 = vunpack.c.l.b16 %v296
        %v347 = vunpack.c.l.b16 %v297
        %v348 = vunpack.c.l.b16 %v298
        %v349 = vpack.c.b16 %v345, %v344
        %v350 = vpack.c.b16 %v347, %v346
        %v351 = vpack.c.b16 %v348, %v348
        %vm354 = vcmask 293888
        %v356 = vsel %vm354, %v331, 0
        %v359 = vsel %vm354, %v332, 0
        %v362 = vsel %vm354, %v333, 0
        %v365 = vsel %vm354, %v334, 0
        %v368 = vsel %vm354, %v335, 0
        %v371 = vsel %vm354, %v336, 0
        %v374 = vsel %vm354, %v337, 0
        %v377 = vsel %vm354, %v338, 0
        %vm379 = vcmask 1041408
        %v381 = vsel %vm379, %v351, 0
        %383 = vmatprep.subr.bf16.mxu0 0
        %384 = vmatpush1.bf16.msra.mxu0 %v349
        %385 = vmatprep.subr.bf16.mxu0 0
        %386 = vmatpush1.bf16.msra.mxu0 %v350
        %387 = vmatprep.subr.bf16.mxu0 0
        %388 = vmatpush1.bf16.msra.mxu0 %v381
        %389 = vmatprep.subr.bf16.mxu0 0
        %390 = vmatpush1.bf16.msra.mxu0 0
        %391 = vmatprep.subr.bf16.mxu0 0
        %392 = vmatpush1.bf16.msra.mxu0 0
        %393 = vmatprep.subr.bf16.mxu0 0
        %394 = vmatpush1.bf16.msra.mxu0 0
        %395 = vmatprep.subr.bf16.mxu0 0
        %396 = vmatpush1.bf16.msra.mxu0 0
        %397 = vmatprep.subr.bf16.mxu0 0
        %398 = vmatpush1.bf16.msra.mxu0 0
        %399 = vmatprep.subr.bf16.mxu0 0
        %400 = vmatpush1.bf16.msra.mxu0 0
        %401 = vmatprep.subr.bf16.mxu0 0
        %402 = vmatpush1.bf16.msra.mxu0 0
        %403 = vmatprep.subr.bf16.mxu0 0
        %404 = vmatpush1.bf16.msra.mxu0 0
        %405 = vmatprep.subr.bf16.mxu0 0
        %406 = vmatpush1.bf16.msra.mxu0 0
        %407 = vmatprep.subr.bf16.mxu0 0
        %408 = vmatpush1.bf16.msra.mxu0 0
        %409 = vmatprep.subr.bf16.mxu0 0
        %410 = vmatpush1.bf16.msra.mxu0 0
        %411 = vmatprep.subr.bf16.mxu0 0
        %412 = vmatpush1.bf16.msra.mxu0 0
        %413 = vmatprep.subr.bf16.mxu0 0
        %414 = vmatpush1.bf16.msra.mxu0 0
        %415 = vmatprep.mubr.bf16.mxu0 0
        %416 = vmatmul.mubr.bf16.gmra.mrb[0].mxu0 %v356
        %v417 = vpop.f32.mrb[0].mxu0
        %v418 = vadd.f32 0.0, %v417
        %v419 = vpop.f32.mrb[0].mxu0
        %v420 = vpop.f32.mrb[0].mxu0
        %v421 = vadd.f32 0.0, %v420
        %v422 = vpop.f32.mrb[0].mxu0
        %423 = vmatprep.mubr.bf16.mxu0 0
        %424 = vmatmul.mubr.bf16.gmra.mrb[0].mxu0 %v359
        %v425 = vpop.f32.mrb[0].mxu0
        %v426 = vadd.f32 0.0, %v425
        %v427 = vpop.f32.mrb[0].mxu0
        %v428 = vpop.f32.mrb[0].mxu0
        %v429 = vadd.f32 0.0, %v428
        %v430 = vpop.f32.mrb[0].mxu0
        %431 = vmatprep.mubr.bf16.mxu0 0
        %432 = vmatmul.mubr.bf16.gmra.mrb[0].mxu0 %v362
        %v433 = vpop.f32.mrb[0].mxu0
        %v434 = vadd.f32 0.0, %v433
        %v435 = vpop.f32.mrb[0].mxu0
        %v436 = vpop.f32.mrb[0].mxu0
        %v437 = vadd.f32 0.0, %v436
        %v438 = vpop.f32.mrb[0].mxu0
        %439 = vmatprep.mubr.bf16.mxu0 0
        %440 = vmatmul.mubr.bf16.gmra.mrb[0].mxu0 %v365
        %v441 = vpop.f32.mrb[0].mxu0
        %v442 = vadd.f32 0.0, %v441
        %v443 = vpop.f32.mrb[0].mxu0
        %v444 = vpop.f32.mrb[0].mxu0
        %v445 = vadd.f32 0.0, %v444
        %v446 = vpop.f32.mrb[0].mxu0
        %447 = vmatprep.mubr.bf16.mxu0 0
        %448 = vmatmul.mubr.bf16.gmra.mrb[0].mxu0 %v368
        %v449 = vpop.f32.mrb[0].mxu0
        %v450 = vadd.f32 0.0, %v449
        %v451 = vpop.f32.mrb[0].mxu0
        %v452 = vpop.f32.mrb[0].mxu0
        %v453 = vadd.f32 0.0, %v452
        %v454 = vpop.f32.mrb[0].mxu0
        %455 = vmatprep.mubr.bf16.mxu0 0
        %456 = vmatmul.mubr.bf16.gmra.mrb[0].mxu0 %v371
        %v457 = vpop.f32.mrb[0].mxu0
        %v458 = vadd.f32 0.0, %v457
        %v459 = vpop.f32.mrb[0].mxu0
        %v460 = vpop.f32.mrb[0].mxu0
        %v461 = vadd.f32 0.0, %v460
        %v462 = vpop.f32.mrb[0].mxu0
        %463 = vmatprep.mubr.bf16.mxu0 0
        %464 = vmatmul.mubr.bf16.gmra.mrb[0].mxu0 %v374
        %v465 = vpop.f32.mrb[0].mxu0
        %v466 = vadd.f32 0.0, %v465
        %v467 = vpop.f32.mrb[0].mxu0
        %v468 = vpop.f32.mrb[0].mxu0
        %v469 = vadd.f32 0.0, %v468
        %v470 = vpop.f32.mrb[0].mxu0
        %471 = vmatprep.mubr.bf16.mxu0 0
        %472 = vmatmul.mubr.bf16.gmra.mrb[0].mxu0 %v377
        %v473 = vpop.f32.mrb[0].mxu0
        %v474 = vadd.f32 0.0, %v473
        %v475 = vpop.f32.mrb[0].mxu0
        %v476 = vpop.f32.mrb[0].mxu0
        %v477 = vadd.f32 0.0, %v476
        %v478 = vpop.f32.mrb[0].mxu0
        %479 = vdwg.mxu0
        %480 = vadd.xlane.f32.xlu0 %v418
        %v481 = vpop.xlane.xlu0 %480
        %482 = vadd.xlane.f32.xlu0 %v421
        %v483 = vpop.xlane.xlu0 %482
        %484 = vadd.xlane.f32.xlu0 %v426
        %v485 = vpop.xlane.xlu0 %484
        %486 = vadd.xlane.f32.xlu0 %v429
        %v487 = vpop.xlane.xlu0 %486
        %488 = vadd.xlane.f32.xlu0 %v434
        %v489 = vpop.xlane.xlu0 %488
        %490 = vadd.xlane.f32.xlu0 %v437
        %v491 = vpop.xlane.xlu0 %490
        %492 = vadd.xlane.f32.xlu0 %v442
        %v493 = vpop.xlane.xlu0 %492
        %494 = vadd.xlane.f32.xlu0 %v445
        %v495 = vpop.xlane.xlu0 %494
        %496 = vadd.xlane.f32.xlu0 %v450
        %v497 = vpop.xlane.xlu0 %496
        %498 = vadd.xlane.f32.xlu0 %v453
        %v499 = vpop.xlane.xlu0 %498
        %500 = vadd.xlane.f32.xlu0 %v458
        %v501 = vpop.xlane.xlu0 %500
        %502 = vadd.xlane.f32.xlu0 %v461
        %v503 = vpop.xlane.xlu0 %502
        %504 = vadd.xlane.f32.xlu0 %v466
        %v505 = vpop.xlane.xlu0 %504
        %506 = vadd.xlane.f32.xlu0 %v469
        %v507 = vpop.xlane.xlu0 %506
        %508 = vadd.xlane.f32.xlu0 %v474
        %v509 = vpop.xlane.xlu0 %508
        %510 = vadd.xlane.f32.xlu0 %v477
        %v511 = vpop.xlane.xlu0 %510
        %vm512 = vcmask 7168
        %513 = vst.msk [vmem:[%s267] sm:$0xff] %vm512, %v481
        %514 = vst.msk [vmem:[%s267 + $0x8] sm:$0xff] %vm512, %v483
        %515 = vst.msk [vmem:[%s267 + $0x10] sm:$0xff] %vm512, %v485
        %516 = vst.msk [vmem:[%s267 + $0x18] sm:$0xff] %vm512, %v487
        %517 = vst.msk [vmem:[%s267 + $0x20] sm:$0xff] %vm512, %v489
        %518 = vst.msk [vmem:[%s267 + $0x28] sm:$0xff] %vm512, %v491
        %519 = vst.msk [vmem:[%s267 + $0x30] sm:$0xff] %vm512, %v493
        %520 = vst.msk [vmem:[%s267 + $0x38] sm:$0xff] %vm512, %v495
        %521 = vst.msk [vmem:[%s267 + $0x40] sm:$0xff] %vm512, %v497
        %522 = vst.msk [vmem:[%s267 + $0x48] sm:$0xff] %vm512, %v499
        %523 = vst.msk [vmem:[%s267 + $0x50] sm:$0xff] %vm512, %v501
        %524 = vst.msk [vmem:[%s267 + $0x58] sm:$0xff] %vm512, %v503
        %525 = vst.msk [vmem:[%s267 + $0x60] sm:$0xff] %vm512, %v505
        %526 = vst.msk [vmem:[%s267 + $0x68] sm:$0xff] %vm512, %v507
        %527 = vst.msk [vmem:[%s267 + $0x70] sm:$0xff] %vm512, %v509
        %528 = vst.msk [vmem:[%s267 + $0x78] sm:$0xff] %vm512, %v511
        %v529 = vmul.f32 %v418, %v418
        %v530 = vmul.f32 %v421, %v421
        %v531 = vmul.f32 %v426, %v426
        %v532 = vmul.f32 %v429, %v429
        %v533 = vmul.f32 %v434, %v434
        %v534 = vmul.f32 %v437, %v437
        %v535 = vmul.f32 %v442, %v442
        %v536 = vmul.f32 %v445, %v445
        %v537 = vmul.f32 %v450, %v450
        %v538 = vmul.f32 %v453, %v453
        %v539 = vmul.f32 %v458, %v458
        %v540 = vmul.f32 %v461, %v461
        %v541 = vmul.f32 %v466, %v466
        %v542 = vmul.f32 %v469, %v469
        %v543 = vmul.f32 %v474, %v474
        %v544 = vmul.f32 %v477, %v477
        %545 = vadd.xlane.f32.xlu0 %v529
        %v546 = vpop.xlane.xlu0 %545
        %547 = vadd.xlane.f32.xlu0 %v530
        %v548 = vpop.xlane.xlu0 %547
        %549 = vadd.xlane.f32.xlu0 %v531
        %v550 = vpop.xlane.xlu0 %549
        %551 = vadd.xlane.f32.xlu0 %v532
        %v552 = vpop.xlane.xlu0 %551
        %553 = vadd.xlane.f32.xlu0 %v533
        %v554 = vpop.xlane.xlu0 %553
        %555 = vadd.xlane.f32.xlu0 %v534
        %v556 = vpop.xlane.xlu0 %555
        %557 = vadd.xlane.f32.xlu0 %v535
        %v558 = vpop.xlane.xlu0 %557
        %559 = vadd.xlane.f32.xlu0 %v536
        %v560 = vpop.xlane.xlu0 %559
        %561 = vadd.xlane.f32.xlu0 %v537
        %v562 = vpop.xlane.xlu0 %561
        %563 = vadd.xlane.f32.xlu0 %v538
        %v564 = vpop.xlane.xlu0 %563
        %565 = vadd.xlane.f32.xlu0 %v539
        %v566 = vpop.xlane.xlu0 %565
        %567 = vadd.xlane.f32.xlu0 %v540
        %v568 = vpop.xlane.xlu0 %567
        %569 = vadd.xlane.f32.xlu0 %v541
        %v570 = vpop.xlane.xlu0 %569
        %571 = vadd.xlane.f32.xlu0 %v542
        %v572 = vpop.xlane.xlu0 %571
        %573 = vadd.xlane.f32.xlu0 %v543
        %v574 = vpop.xlane.xlu0 %573
        %575 = vadd.xlane.f32.xlu0 %v544
        %v576 = vpop.xlane.xlu0 %575
        %577 = vst.msk [vmem:[%s276] sm:$0xff] %vm512, %v546
        %578 = vst.msk [vmem:[%s276 + $0x8] sm:$0xff] %vm512, %v548
        %579 = vst.msk [vmem:[%s276 + $0x10] sm:$0xff] %vm512, %v550
        %580 = vst.msk [vmem:[%s276 + $0x18] sm:$0xff] %vm512, %v552
        %581 = vst.msk [vmem:[%s276 + $0x20] sm:$0xff] %vm512, %v554
        %582 = vst.msk [vmem:[%s276 + $0x28] sm:$0xff] %vm512, %v556
        %583 = vst.msk [vmem:[%s276 + $0x30] sm:$0xff] %vm512, %v558
        %584 = vst.msk [vmem:[%s276 + $0x38] sm:$0xff] %vm512, %v560
        %585 = vst.msk [vmem:[%s276 + $0x40] sm:$0xff] %vm512, %v562
        %586 = vst.msk [vmem:[%s276 + $0x48] sm:$0xff] %vm512, %v564
        %587 = vst.msk [vmem:[%s276 + $0x50] sm:$0xff] %vm512, %v566
        %588 = vst.msk [vmem:[%s276 + $0x58] sm:$0xff] %vm512, %v568
        %589 = vst.msk [vmem:[%s276 + $0x60] sm:$0xff] %vm512, %v570
        %590 = vst.msk [vmem:[%s276 + $0x68] sm:$0xff] %vm512, %v572
        %591 = vst.msk [vmem:[%s276 + $0x70] sm:$0xff] %vm512, %v574
        %592 = vst.msk [vmem:[%s276 + $0x78] sm:$0xff] %vm512, %v576
        %p593 = scmp.lt.s32.totalorder %s19, 1
        %s594 = scalar_select %p593, %s19, 1
        %p595 = scmp.lt.s32.totalorder %s20, 1
        %s596 = scalar_select %p595, %s20, 1
        %s597 = smul.addr %s596, 16
        %s598 = smul.addr %s594, 32
        %s599 = sadd.s32 %s597, %s598
        %s600 = smul.addr %s599, 8
        %s601 = scalar_lea.vmem %s2, %s600
        %p602 = scmp.lt.s32.totalorder %s19, 1
        %s603 = scalar_select %p602, %s19, 1
        %p604 = scmp.lt.s32.totalorder %s20, 1
        %s605 = scalar_select %p604, %s20, 1
        %s606 = smul.addr %s605, 16
        %s607 = smul.addr %s603, 32
        %s608 = sadd.s32 %s606, %s607
        %s609 = smul.addr %s608, 8
        %s610 = scalar_lea.vmem %s3, %s609
        // Predicated region
        $region70: #{tpu_custom_call.1} parent=64 // pred_check
          %p611 = pneg %p96
        $region71: #{tpu_custom_call.1} parent=64 // pred_check_branch
          %613 = sbr.rel (%p611) target = $region73
        $region72: #{tpu_custom_call.1} parent=64 // pred_region
          _
        $region73: #{tpu_custom_call.1} parent=64 // pred_fallthru
          _
        // Predicated region
        $region74: #{tpu_custom_call.1} parent=64 // pred_check
          %p614 = pneg %p124
        $region75: #{tpu_custom_call.1} parent=64 // pred_check_branch
          %616 = sbr.rel (%p614) target = $region77
        $region76: #{tpu_custom_call.1} parent=64 // pred_region
          _
        $region77: #{tpu_custom_call.1} parent=64 // pred_fallthru
          _
      $region65: #{tpu_custom_call.1} parent=5 // pred_fallthru
        _
      %p617 = scmp.le.s32.totalorder 2, %s10
      // Predicated region
      $region78: #{tpu_custom_call.1} parent=5 // pred_check
        %p618 = pneg %p617
      $region79: #{tpu_custom_call.1} parent=5 // pred_check_branch
        %620 = sbr.rel (%p618) target = $region81
      $region80: #{tpu_custom_call.1} parent=5 // pred_region
        %s621 = ssub.s32 %s10, 2
        // Predicated region
        $region82: #{tpu_custom_call.1} parent=80 // pred_check
          %p622 = pneg %p102
        $region83: #{tpu_custom_call.1} parent=80 // pred_check_branch
          %624 = sbr.rel (%p622) target = $region85
        $region84: #{tpu_custom_call.1} parent=80 // pred_region
          %p625 = scmp.lt.s32.totalorder %s21, 1
          %s626 = scalar_select %p625, %s21, 1
          %p627 = scmp.lt.s32.totalorder %s22, 1
          %s628 = scalar_select %p627, %s22, 1
          %s629 = smul.addr %s628, 16
          %s630 = smul.addr %s626, 32
          %s631 = sadd.s32 %s629, %s630
          %s632 = smul.addr %s631, 8
          %s633 = scalar_lea.vmem %s2, %s632
        $region85: #{tpu_custom_call.1} parent=80 // pred_fallthru
          _
        // Predicated region
        $region86: #{tpu_custom_call.1} parent=80 // pred_check
          %p634 = pneg %p130
        $region87: #{tpu_custom_call.1} parent=80 // pred_check_branch
          %636 = sbr.rel (%p634) target = $region89
        $region88: #{tpu_custom_call.1} parent=80 // pred_region
          %p637 = scmp.lt.s32.totalorder %s21, 1
          %s638 = scalar_select %p637, %s21, 1
          %p639 = scmp.lt.s32.totalorder %s22, 1
          %s640 = scalar_select %p639, %s22, 1
          %s641 = smul.addr %s640, 16
          %s642 = smul.addr %s638, 32
          %s643 = sadd.s32 %s641, %s642
          %s644 = smul.addr %s643, 8
          %s645 = scalar_lea.vmem %s3, %s644
        $region89: #{tpu_custom_call.1} parent=80 // pred_fallthru
          _
      $region81: #{tpu_custom_call.1} parent=5 // pred_fallthru
        _
    $region6: #{tpu_custom_call.1} parent=1 // loop_footer
      %s14 = sadd.s32 1, %s10
    $region7: #{tpu_custom_call.1} parent=1 // loop_footer_branch
      %9 = sbr.rel target = $region3
    $region8: #{tpu_custom_call.1} parent=1 // loop_exit
      _

</llo_original>
